<compile_context>
chip_gen: v5e
topology: v5e:2x2
jax: 0.10.0
libtpu: 0.0.40
codegen_flags: <defaults>
</compile_context>

<pallas_src>
from functools import partial

import jax
import jax.numpy as jnp
from jax.experimental import pallas as pl
from jax.experimental.pallas import tpu as pltpu


def _ha_r_kernel(xpad_ref, apad_ref, w_ref, b_ref, o_ref, *, tile_h, W, Cp):
    # xpad_ref: (1, H+2, W+2, Cp)  zero-padded (halo + channel-pad) x, resident per n
    # apad_ref: (1, H+2, W+2, 1)   zero-padded attention map
    # w_ref:    (9*Cp, Cp)         conv weight, im2col layout (dy, dx, ci) x co
    # b_ref:    (1, Cp)            conv bias
    # o_ref:    (1, tile_h, W, Cp) output row-tile
    t = pl.program_id(1)
    row0 = pl.multiple_of(t * tile_h, tile_h)

    # Just-in-time gating of only the rows this tile needs (+1 halo row each side).
    x_rows = xpad_ref[0, pl.ds(row0, tile_h + 2), :, :]   # (tile_h+2, W+2, Cp)
    a_rows = apad_ref[0, pl.ds(row0, tile_h + 2), :, :]   # (tile_h+2, W+2, 1)
    y = x_rows * a_rows                                   # lane-broadcast gate

    # im2col: 9 shifted (tile_h, W, Cp) windows -> (tile_h*W, 9*Cp) patch,
    # contracted in ONE MXU matmul against the (9*Cp, Cp) weight.
    M = tile_h * W
    cols = [
        y[dy:dy + tile_h, dx:dx + W, :].reshape(M, Cp)
        for dy in range(3) for dx in range(3)
    ]
    patch = jnp.concatenate(cols, axis=-1)                # (M, 9*Cp)
    acc = jnp.dot(patch, w_ref[...], preferred_element_type=jnp.float32)
    acc = acc + b_ref[...]                                # bias added once per tile

    # Residual add with the original (ungated) x rows of this tile.
    res = x_rows[1:1 + tile_h, 1:1 + W, :].reshape(M, Cp)
    o_ref[0] = (acc + res).astype(o_ref.dtype).reshape(tile_h, W, Cp)


def ha_r_forward(attention, x, weight, bias):
    """attention: (N,1,H,W), x: (N,C,H,W) in PyTorch NCHW.
    weight: (3,3,C,C) HWIO, bias: (C,).  Returns (N,C,H,W)."""
    N, C, H, W = x.shape
    Cp = ((C + 127) // 128) * 128                         # pad channels to lane width
    tile_h = next(t for t in (8, 4, 2, 1) if H % t == 0)  # row-tile height
    T = H // tile_h

    x_nhwc = jnp.transpose(x, (0, 2, 3, 1))               # (N, H, W, C)
    a_nhwc = jnp.transpose(attention, (0, 2, 3, 1))       # (N, H, W, 1)
    # One pad covering both the SAME-conv halo and the channel padding.
    xpad = jnp.pad(x_nhwc, ((0, 0), (1, 1), (1, 1), (0, Cp - C)))
    apad = jnp.pad(a_nhwc, ((0, 0), (1, 1), (1, 1), (0, 0)))

    # im2col weight: (3,3,C,C) HWIO -> channel-padded -> (9*Cp, Cp), ordered (dy, dx, ci).
    w_p = jnp.pad(weight, ((0, 0), (0, 0), (0, Cp - C), (0, Cp - C)))
    w_flat = w_p.reshape(9 * Cp, Cp).astype(x.dtype)
    b_p = jnp.pad(bias, (0, Cp - C)).reshape(1, Cp).astype(jnp.float32)

    out_nhwc = pl.pallas_call(
        partial(_ha_r_kernel, tile_h=tile_h, W=W, Cp=Cp),
        out_shape=jax.ShapeDtypeStruct((N, H, W, Cp), x.dtype),
        grid=(N, T),
        in_specs=[
            pl.BlockSpec((1, H + 2, W + 2, Cp), lambda n, t: (n, 0, 0, 0)),
            pl.BlockSpec((1, H + 2, W + 2, 1), lambda n, t: (n, 0, 0, 0)),
            pl.BlockSpec((9 * Cp, Cp), lambda n, t: (0, 0)),
            pl.BlockSpec((1, Cp), lambda n, t: (0, 0)),
        ],
        out_specs=pl.BlockSpec((1, tile_h, W, Cp), lambda n, t: (n, t, 0, 0)),
        compiler_params=pltpu.CompilerParams(
            dimension_semantics=("parallel", "parallel")),
    )(xpad, apad, w_flat, b_p)

    return jnp.transpose(out_nhwc[..., :C], (0, 3, 1, 2))  # back to NCHW


def ha_r_reference(attention, x, weight, bias):
    """Pure-JAX reference matching PyTorch Conv2d(k=3, pad=1) semantics."""
    y = x * attention                                      # NCHW broadcast
    y_nhwc = jnp.transpose(y, (0, 2, 3, 1))
    out = jax.lax.conv_general_dilated(
        y_nhwc, weight, window_strides=(1, 1), padding="SAME",
        dimension_numbers=("NHWC", "HWIO", "NHWC"))
    out = out + bias.reshape(1, 1, 1, -1)
    return jnp.transpose(out, (0, 3, 1, 2)) + x


if __name__ == "__main__":
    N, C, H, W = 2, 4, 16, 16

    key = jax.random.PRNGKey(0)
    k_att, k_x, k_w, k_b = jax.random.split(key, 4)

    # Deterministic synthetic parameters (shapes from nn.Conv2d(C, C, 3, padding=1)).
    fan_in = C * 3 * 3
    bound = 1.0 / jnp.sqrt(fan_in)
    weight = jax.random.uniform(k_w, (3, 3, C, C), jnp.float32, -bound, bound)  # HWIO
    bias = jax.random.uniform(k_b, (C,), jnp.float32, -bound, bound)

    # Deterministic inputs: attention is a (N,1,H,W) soft map, x is (N,C,H,W).
    attention = jax.nn.sigmoid(jax.random.normal(k_att, (N, 1, H, W), jnp.float32))
    x = jax.random.normal(k_x, (N, C, H, W), jnp.float32)

    out = ha_r_forward(attention, x, weight, bias)
    out = jax.block_until_ready(out)

    ref = jax.block_until_ready(ha_r_reference(attention, x, weight, bias))
    assert out.shape == (N, C, H, W)
    assert jnp.allclose(out, ref, atol=1e-4, rtol=1e-4), "mismatch vs JAX conv reference"

    print("KERNEL_OK")
</pallas_src>

<mosaic_0001>
module attributes {stable_mosaic.version = 11 : i64} {
  func.func @_ha_r_kernel(%arg0: i32, %arg1: i32, %arg2: memref<1x18x18x128xf32, #tpu.memory_space<vmem>>, %arg3: memref<1x18x18x1xf32, #tpu.memory_space<vmem>>, %arg4: memref<1152x128xf32, #tpu.memory_space<vmem>>, %arg5: memref<1x128xf32, #tpu.memory_space<vmem>>, %arg6: memref<1x8x16x128xf32, #tpu.memory_space<vmem>>) attributes {dimension_semantics = [#tpu.dimension_semantics<parallel>, #tpu.dimension_semantics<parallel>], iteration_bounds = array<i64: 2, 2>, scalar_prefetch = 0 : i64, scratch_operands = 0 : i64, tpu.core_type = #tpu.core_type<tc>, window_params = [{transform_indices = @transform_0, window_bounds = array<i64: 1, 18, 18, 128>}, {transform_indices = @transform_1, window_bounds = array<i64: 1, 18, 18, 1>}, {pipeline_mode = #tpu.pipeline_mode<synchronous>, transform_indices = @transform_2, window_bounds = array<i64: 1152, 128>}, {pipeline_mode = #tpu.pipeline_mode<synchronous>, transform_indices = @transform_3, window_bounds = array<i64: 1, 128>}, {transform_indices = @transform_4, window_bounds = array<i64: 1, 8, 16, 128>}]} {
    %c8_i32 = arith.constant 8 : i32
    %0 = arith.muli %arg1, %c8_i32 : i32
    %1 = tpu.assume_multiple %0, 8 : i32
    %c0 = arith.constant 0 : index
    %2 = arith.index_cast %1 : i32 to index
    %c0_0 = arith.constant 0 : index
    %c0_1 = arith.constant 0 : index
    %3 = vector.load %arg2[%c0, %2, %c0_0, %c0_1] : memref<1x18x18x128xf32, #tpu.memory_space<vmem>>, vector<1x10x18x128xf32>
    %4 = vector.shape_cast %3 : vector<1x10x18x128xf32> to vector<10x18x128xf32>
    %c0_2 = arith.constant 0 : index
    %5 = arith.index_cast %1 : i32 to index
    %c0_3 = arith.constant 0 : index
    %c0_4 = arith.constant 0 : index
    %6 = vector.load %arg3[%c0_2, %5, %c0_3, %c0_4] : memref<1x18x18x1xf32, #tpu.memory_space<vmem>>, vector<1x10x18x1xf32>
    %7 = vector.shape_cast %6 : vector<1x10x18x1xf32> to vector<10x18x1xf32>
    %8 = vector.broadcast %7 : vector<10x18x1xf32> to vector<10x18x128xf32>
    %9 = arith.mulf %4, %8 : vector<10x18x128xf32>
    %10 = vector.extract_strided_slice %9 {offsets = [0, 0, 0], sizes = [8, 16, 128], strides = [1, 1, 1]} : vector<10x18x128xf32> to vector<8x16x128xf32>
    %11 = vector.shape_cast %10 : vector<8x16x128xf32> to vector<128x128xf32>
    %12 = vector.extract_strided_slice %9 {offsets = [0, 1, 0], sizes = [8, 16, 128], strides = [1, 1, 1]} : vector<10x18x128xf32> to vector<8x16x128xf32>
    %13 = vector.shape_cast %12 : vector<8x16x128xf32> to vector<128x128xf32>
    %14 = vector.extract_strided_slice %9 {offsets = [0, 2, 0], sizes = [8, 16, 128], strides = [1, 1, 1]} : vector<10x18x128xf32> to vector<8x16x128xf32>
    %15 = vector.shape_cast %14 : vector<8x16x128xf32> to vector<128x128xf32>
    %16 = vector.extract_strided_slice %9 {offsets = [1, 0, 0], sizes = [8, 16, 128], strides = [1, 1, 1]} : vector<10x18x128xf32> to vector<8x16x128xf32>
    %17 = vector.shape_cast %16 : vector<8x16x128xf32> to vector<128x128xf32>
    %18 = vector.extract_strided_slice %9 {offsets = [1, 1, 0], sizes = [8, 16, 128], strides = [1, 1, 1]} : vector<10x18x128xf32> to vector<8x16x128xf32>
    %19 = vector.shape_cast %18 : vector<8x16x128xf32> to vector<128x128xf32>
    %20 = vector.extract_strided_slice %9 {offsets = [1, 2, 0], sizes = [8, 16, 128], strides = [1, 1, 1]} : vector<10x18x128xf32> to vector<8x16x128xf32>
    %21 = vector.shape_cast %20 : vector<8x16x128xf32> to vector<128x128xf32>
    %22 = vector.extract_strided_slice %9 {offsets = [2, 0, 0], sizes = [8, 16, 128], strides = [1, 1, 1]} : vector<10x18x128xf32> to vector<8x16x128xf32>
    %23 = vector.shape_cast %22 : vector<8x16x128xf32> to vector<128x128xf32>
    %24 = vector.extract_strided_slice %9 {offsets = [2, 1, 0], sizes = [8, 16, 128], strides = [1, 1, 1]} : vector<10x18x128xf32> to vector<8x16x128xf32>
    %25 = vector.shape_cast %24 : vector<8x16x128xf32> to vector<128x128xf32>
    %26 = vector.extract_strided_slice %9 {offsets = [2, 2, 0], sizes = [8, 16, 128], strides = [1, 1, 1]} : vector<10x18x128xf32> to vector<8x16x128xf32>
    %27 = vector.shape_cast %26 : vector<8x16x128xf32> to vector<128x128xf32>
    %28 = tpu.concatenate %11, %13, %15, %17, %19, %21, %23, %25, %27 in 1 : vector<128x128xf32>, vector<128x128xf32>, vector<128x128xf32>, vector<128x128xf32>, vector<128x128xf32>, vector<128x128xf32>, vector<128x128xf32>, vector<128x128xf32>, vector<128x128xf32> -> vector<128x1152xf32>
    %c0_5 = arith.constant 0 : index
    %c0_6 = arith.constant 0 : index
    %29 = vector.load %arg4[%c0_5, %c0_6] : memref<1152x128xf32, #tpu.memory_space<vmem>>, vector<1152x128xf32>
    %cst = arith.constant dense<0.000000e+00> : vector<128x128xf32>
    %30 = tpu.matmul %28, %29, %cst {dimension_numbers = #tpu.dot_dimension_numbers<[1], [0], [0], [1], [0, 0, 1, 1], [], []>} : vector<128x1152xf32>, vector<1152x128xf32>, vector<128x128xf32> -> vector<128x128xf32>
    %c0_7 = arith.constant 0 : index
    %c0_8 = arith.constant 0 : index
    %31 = vector.load %arg5[%c0_7, %c0_8] : memref<1x128xf32, #tpu.memory_space<vmem>>, vector<1x128xf32>
    %32 = vector.broadcast %31 : vector<1x128xf32> to vector<128x128xf32>
    %33 = arith.addf %30, %32 : vector<128x128xf32>
    %34 = vector.extract_strided_slice %4 {offsets = [1, 1, 0], sizes = [8, 16, 128], strides = [1, 1, 1]} : vector<10x18x128xf32> to vector<8x16x128xf32>
    %35 = vector.shape_cast %34 : vector<8x16x128xf32> to vector<128x128xf32>
    %36 = arith.addf %33, %35 : vector<128x128xf32>
    %37 = vector.shape_cast %36 : vector<128x128xf32> to vector<8x16x128xf32>
    %c0_9 = arith.constant 0 : index
    %c0_10 = arith.constant 0 : index
    %c0_11 = arith.constant 0 : index
    %c0_12 = arith.constant 0 : index
    %38 = vector.load %arg6[%c0_9, %c0_10, %c0_11, %c0_12] : memref<1x8x16x128xf32, #tpu.memory_space<vmem>>, vector<1x8x16x128xf32>
    %39 = vector.shape_cast %38 : vector<1x8x16x128xf32> to vector<8x16x128xf32>
    %40 = vector.shape_cast %37 : vector<8x16x128xf32> to vector<1x8x16x128xf32>
    tpu.vector_store %arg6[%c0_9, %c0_10, %c0_11, %c0_12], %40 {strides = array<i32>} : memref<1x8x16x128xf32, #tpu.memory_space<vmem>>, vector<1x8x16x128xf32>,
    return
  }
  func.func @transform_0(%arg0: i32, %arg1: i32) -> (i32, i32, i32, i32) {
    %c0_i32 = arith.constant 0 : i32
    %c0_i32_0 = arith.constant 0 : i32
    %c0_i32_1 = arith.constant 0 : i32
    %c0_i32_2 = arith.constant 0 : i32
    return %arg0, %c0_i32, %c0_i32_0, %c0_i32_1 : i32, i32, i32, i32
  }
  func.func @transform_1(%arg0: i32, %arg1: i32) -> (i32, i32, i32, i32) {
    %c0_i32 = arith.constant 0 : i32
    %c0_i32_0 = arith.constant 0 : i32
    %c0_i32_1 = arith.constant 0 : i32
    %c0_i32_2 = arith.constant 0 : i32
    return %arg0, %c0_i32, %c0_i32_0, %c0_i32_1 : i32, i32, i32, i32
  }
  func.func @transform_2(%arg0: i32, %arg1: i32) -> (i32, i32) {
    %c0_i32 = arith.constant 0 : i32
    %c0_i32_0 = arith.constant 0 : i32
    %c0_i32_1 = arith.constant 0 : i32
    return %c0_i32, %c0_i32_0 : i32, i32
  }
  func.func @transform_3(%arg0: i32, %arg1: i32) -> (i32, i32) {
    %c0_i32 = arith.constant 0 : i32
    %c0_i32_0 = arith.constant 0 : i32
    %c0_i32_1 = arith.constant 0 : i32
    return %c0_i32, %c0_i32_0 : i32, i32
  }
  func.func @transform_4(%arg0: i32, %arg1: i32) -> (i32, i32, i32, i32) {
    %c0_i32 = arith.constant 0 : i32
    %c0_i32_0 = arith.constant 0 : i32
    %c0_i32_1 = arith.constant 0 : i32
    return %arg0, %arg1, %c0_i32, %c0_i32_0 : i32, i32, i32, i32
  }
}

</mosaic_0001>

<llo_original>
// kernel: tpu_custom_call.1
$region0: #{tpu_custom_call.1}
  #allocation0 [shape = 'u32[]', space=smem, size = 0x4, offset = 0x4, fixed_abs, tag = 'smem constant byte address 0x4 - core index']
  #allocation1 [shape = 'u32[72,128]{1,0:T(1,128)}', space=vmem, size = 0x9000, scoped, tag = 'internal scratch']
  %s0 = inlined_call_operand.vmem [shape: f32[2,18,18,128], index: 0, kind: input, shape index: {}]
  %s1 = inlined_call_operand.vmem [shape: f32[2,18,18,1], index: 1, kind: input, shape index: {}]
  %s2 = inlined_call_operand.vmem [shape: f32[1152,128], index: 2, kind: input, shape index: {}]
  %s3 = inlined_call_operand.vmem [shape: f32[1,128], index: 3, kind: input, shape index: {}]
  %s4 = inlined_call_operand.hbm [shape: f32[2,16,16,128], index: 4, kind: output, shape index: {}]
  %s5 = sld [smem:[#allocation0]]
  $region49: #{tpu_custom_call.1} parent=0
    _
  %s7 = ssub.s32 1, %s5
  %s8 = scalar_select 0, %s7, %s5
  $region1: #{tpu_custom_call.1} parent=0
    #allocation2 [shape = 'u8[131072]{0}', space=vmem, size = 0x20000, scoped, tag = 'output window, operand 0']
    #allocation3 [shape = 's32[2]{0}', space=sflag, size = 0x8, scoped, tag = 'scoped memory for tpu_custom_call.1']
    %9 = vsyncpa [#allocation3], 0
    %s10 = scalar_lea.sflag [#allocation3], 1
    %11 = vsyncpa %s10, 0
    loop: start=0, step=1, limit=6
    $region2: #{tpu_custom_call.1} parent=1 // loop_pre_header
      _
    $region3: #{tpu_custom_call.1} parent=1 // loop_header
      %s13 = sphi 0, %s17
      %p14 = scmp.ge.s32.totalorder %s13, 6
      %s20 = sphi 0, %s32
      %s21 = sphi 0, %s28
      %s22 = sphi 0, %s20
      %s23 = sphi 0, %s21
      %s24 = sphi 0, %s22
      %s25 = sphi 0, %s23
      %s35 = sphi 0, %s37
      %s38 = sphi 0, %s35
      %s39 = sphi 0, %s38
      %s55 = sphi 0, %s39
      %s61 = sphi 0, %s63
      %s64 = sphi 0, %s61
      %s65 = sphi 0, %s64
      %s81 = sphi 0, %s65
      %s85 = sphi 0, %s85
      %s87 = sphi 0, %s85
      %s88 = sphi 0, %s87
      %s102 = sphi 0, %s88
      %s106 = sphi 0, %s106
      %s108 = sphi 0, %s106
      %s109 = sphi 0, %s108
      %s123 = sphi 0, %s109
      %s131 = sphi 0, %s133
      %s134 = sphi 0, %s131
      %s135 = sphi 0, %s134
      %s151 = sphi 0, %s135
    $region4: #{tpu_custom_call.1} parent=1 // loop_header_branch
      %16 = sbr.rel (%p14) target = $region8
    $region5: #{tpu_custom_call.1} parent=1 // loop_body
      %s18 = ssub.s32 %s13, 1
      %s19 = ssub.s32 %s13, 2
      %s26 = sadd.s32 1, %s21
      %p27 = scmp.ge.s32.totalorder %s26, 2
      %s28 = scalar_select %p27, 0, %s26
      %s29 = sadd.s32 1, %s20
      %s30 = scalar_select %p27, %s29, %s20
      %p31 = scmp.ge.s32.totalorder %s30, 2
      %s32 = scalar_select %p31, 0, %s30
      %s33 = ssub.s32 %s20, %s32
      %p34 = scmp.eq.s32.totalorder %s33, 0
      %s36 = sadd.s32 %s35, 1
      %s37 = scalar_select %p34, %s35, %s36
      %p40 = pneg %p34
      %p41 = scmp.eq.s32.totalorder %s13, 3
      %p42 = por %p40, %p41
      %p43 = scmp.ne.s32.totalorder %s35, %s38
      %p44 = scmp.eq.s32.totalorder %s13, 0
      %p45 = por %p43, %p44
      %p46 = scmp.ne.s32.totalorder %s35, %s38
      %p47 = scmp.eq.s32.totalorder %s18, 3
      %p48 = por %p46, %p47
      %p49 = scmp.ne.s32.totalorder %s38, %s39
      %p50 = scmp.eq.s32.totalorder %s18, 0
      %p51 = por %p49, %p50
      %p52 = scmp.ne.s32.totalorder %s38, %s39
      %p53 = scmp.eq.s32.totalorder %s19, 3
      %p54 = por %p52, %p53
      %p56 = scmp.ne.s32.totalorder %s39, %s55
      %p57 = scmp.eq.s32.totalorder %s19, 0
      %p58 = por %p56, %p57
      %s59 = ssub.s32 %s20, %s32
      %p60 = scmp.eq.s32.totalorder %s59, 0
      %s62 = sadd.s32 %s61, 1
      %s63 = scalar_select %p60, %s61, %s62
      %p66 = pneg %p60
      %p67 = scmp.eq.s32.totalorder %s13, 3
      %p68 = por %p66, %p67
      %p69 = scmp.ne.s32.totalorder %s61, %s64
      %p70 = scmp.eq.s32.totalorder %s13, 0
      %p71 = por %p69, %p70
      %p72 = scmp.ne.s32.totalorder %s61, %s64
      %p73 = scmp.eq.s32.totalorder %s18, 3
      %p74 = por %p72, %p73
      %p75 = scmp.ne.s32.totalorder %s64, %s65
      %p76 = scmp.eq.s32.totalorder %s18, 0
      %p77 = por %p75, %p76
      %p78 = scmp.ne.s32.totalorder %s64, %s65
      %p79 = scmp.eq.s32.totalorder %s19, 3
      %p80 = por %p78, %p79
      %p82 = scmp.ne.s32.totalorder %s65, %s81
      %p83 = scmp.eq.s32.totalorder %s19, 0
      %p84 = por %p82, %p83
      %s86 = sadd.s32 %s85, 1
      %p89 = scmp.eq.s32.totalorder %s13, 3
      %p90 = scmp.ne.s32.totalorder %s85, %s87
      %p91 = scmp.eq.s32.totalorder %s13, 0
      %p92 = por %p90, %p91
      %p93 = scmp.ne.s32.totalorder %s85, %s87
      %p94 = scmp.eq.s32.totalorder %s18, 3
      %p95 = por %p93, %p94
      %p96 = scmp.ne.s32.totalorder %s87, %s88
      %p97 = scmp.eq.s32.totalorder %s18, 0
      %p98 = por %p96, %p97
      %p99 = scmp.ne.s32.totalorder %s87, %s88
      %p100 = scmp.eq.s32.totalorder %s19, 3
      %p101 = por %p99, %p100
      %p103 = scmp.ne.s32.totalorder %s88, %s102
      %p104 = scmp.eq.s32.totalorder %s19, 0
      %p105 = por %p103, %p104
      %s107 = sadd.s32 %s106, 1
      %p110 = scmp.eq.s32.totalorder %s13, 3
      %p111 = scmp.ne.s32.totalorder %s106, %s108
      %p112 = scmp.eq.s32.totalorder %s13, 0
      %p113 = por %p111, %p112
      %p114 = scmp.ne.s32.totalorder %s106, %s108
      %p115 = scmp.eq.s32.totalorder %s18, 3
      %p116 = por %p114, %p115
      %p117 = scmp.ne.s32.totalorder %s108, %s109
      %p118 = scmp.eq.s32.totalorder %s18, 0
      %p119 = por %p117, %p118
      %p120 = scmp.ne.s32.totalorder %s108, %s109
      %p121 = scmp.eq.s32.totalorder %s19, 3
      %p122 = por %p120, %p121
      %p124 = scmp.ne.s32.totalorder %s109, %s123
      %p125 = scmp.eq.s32.totalorder %s19, 0
      %p126 = por %p124, %p125
      %s127 = ssub.s32 %s20, %s32
      %s128 = ssub.s32 %s21, %s28
      %s129 = sor.u32 %s127, %s128
      %p130 = scmp.eq.s32.totalorder %s129, 0
      %s132 = sadd.s32 %s131, 1
      %s133 = scalar_select %p130, %s131, %s132
      %p136 = pneg %p130
      %p137 = scmp.eq.s32.totalorder %s13, 3
      %p138 = por %p136, %p137
      %p139 = scmp.ne.s32.totalorder %s131, %s134
      %p140 = scmp.eq.s32.totalorder %s13, 0
      %p141 = por %p139, %p140
      %p142 = scmp.ne.s32.totalorder %s131, %s134
      %p143 = scmp.eq.s32.totalorder %s18, 3
      %p144 = por %p142, %p143
      %p145 = scmp.ne.s32.totalorder %s134, %s135
      %p146 = scmp.eq.s32.totalorder %s18, 0
      %p147 = por %p145, %p146
      %p148 = scmp.ne.s32.totalorder %s134, %s135
      %p149 = scmp.eq.s32.totalorder %s19, 3
      %p150 = por %p148, %p149
      %p152 = scmp.ne.s32.totalorder %s135, %s151
      %p153 = scmp.eq.s32.totalorder %s19, 0
      %p154 = por %p152, %p153
      %p155 = scmp.le.s32.totalorder 1, %s13
      %p156 = scmp.lt.s32.totalorder %s13, 5
      %p157 = pnand %p155, %p156
      %p158 = pneg %p157
      // Predicated region
      $region9: #{tpu_custom_call.1} parent=5 // pred_check
        _
      $region10: #{tpu_custom_call.1} parent=5 // pred_check_branch
        %160 = sbr.rel (%p157) target = $region12
      $region11: #{tpu_custom_call.1} parent=5 // pred_region
        %s161 = ssub.s32 %s13, 1
        // Predicated region
        $region13: #{tpu_custom_call.1} parent=11 // pred_check
          %p162 = pneg %p98
        $region14: #{tpu_custom_call.1} parent=11 // pred_check_branch
          %164 = sbr.rel (%p162) target = $region16
        $region15: #{tpu_custom_call.1} parent=11 // pred_region
          _
        $region16: #{tpu_custom_call.1} parent=11 // pred_fallthru
          _
        // Predicated region
        $region17: #{tpu_custom_call.1} parent=11 // pred_check
          %p165 = pneg %p119
        $region18: #{tpu_custom_call.1} parent=11 // pred_check_branch
          %167 = sbr.rel (%p165) target = $region20
        $region19: #{tpu_custom_call.1} parent=11 // pred_region
          _
        $region20: #{tpu_custom_call.1} parent=11 // pred_fallthru
          _
      $region12: #{tpu_custom_call.1} parent=5 // pred_fallthru
        _
      %p168 = scmp.lt.s32.totalorder %s13, 4
      // Predicated region
      $region21: #{tpu_custom_call.1} parent=5 // pred_check
        %p169 = pneg %p168
      $region22: #{tpu_custom_call.1} parent=5 // pred_check_branch
        %171 = sbr.rel (%p169) target = $region24
      $region23: #{tpu_custom_call.1} parent=5 // pred_region
        // Predicated region
        $region25: #{tpu_custom_call.1} parent=23 // pred_check
          %p172 = pneg %p45
        $region26: #{tpu_custom_call.1} parent=23 // pred_check_branch
          %174 = sbr.rel (%p172) target = $region28
        $region27: #{tpu_custom_call.1} parent=23 // pred_region
          %p175 = scmp.lt.s32.totalorder %s20, 1
          %s176 = scalar_select %p175, %s20, 1
          %s177 = smul.addr %s176, 54
          %s178 = smul.addr %s177, 8
          %s179 = scalar_lea.vmem %s0, %s178
        $region28: #{tpu_custom_call.1} parent=23 // pred_fallthru
          _
        // Predicated region
        $region29: #{tpu_custom_call.1} parent=23 // pred_check
          %p180 = pneg %p71
        $region30: #{tpu_custom_call.1} parent=23 // pred_check_branch
          %182 = sbr.rel (%p180) target = $region32
        $region31: #{tpu_custom_call.1} parent=23 // pred_region
          %p183 = scmp.lt.s32.totalorder %s20, 1
          %s184 = scalar_select %p183, %s20, 1
          %s185 = smul.addr %s184, 54
          %s186 = smul.addr %s185, 8
          %s187 = scalar_lea.vmem %s1, %s186
        $region32: #{tpu_custom_call.1} parent=23 // pred_fallthru
          _
      $region24: #{tpu_custom_call.1} parent=5 // pred_fallthru
        _
      %p188 = scmp.le.s32.totalorder 1, %s13
      %p189 = scmp.lt.s32.totalorder %s13, 5
      %p190 = pnand %p188, %p189
      %p191 = pneg %p190
      // Predicated region
      $region33: #{tpu_custom_call.1} parent=5 // pred_check
        _
      $region34: #{tpu_custom_call.1} parent=5 // pred_check_branch
        %193 = sbr.rel (%p190) target = $region36
      $region35: #{tpu_custom_call.1} parent=5 // pred_region
        %s194 = ssub.s32 %s13, 1
        %p195 = scmp.lt.s32.totalorder %s22, 1
        %s196 = scalar_select %p195, %s22, 1
        %s197 = smul.addr %s196, 54
        %s198 = smul.addr %s197, 8
        %s199 = scalar_lea.vmem %s0, %s198
        %p200 = pneg %p51
        %p201 = pneg %p48
        %p202 = scmp.lt.s32.totalorder %s22, 1
        %s203 = scalar_select %p202, %s22, 1
        %s204 = smul.addr %s203, 54
        %s205 = smul.addr %s204, 8
        %s206 = scalar_lea.vmem %s1, %s205
        %p207 = pneg %p77
        %p208 = pneg %p74
        %p209 = pneg %p98
        %p210 = pneg %p95
        %p211 = pneg %p119
        %p212 = pneg %p116
        %p213 = pneg %p147
        %p214 = pneg %p144
        %s215 = sand.u32 %s134, 1
        %s216 = scalar_lea.sflag [#allocation3], %s215
        %s217 = sand.u32 %s134, 1
        %s218 = smul.addr %s217, 128
        %s219 = scalar_lea.vmem [#allocation2], %s218
        %p220 = scmp.lt.s32.totalorder %s22, 1
        %s221 = scalar_select %p220, %s22, 1
        %s222 = smul.addr %s221, 54
        %s223 = smul.addr %s222, 8
        %s224 = scalar_lea.vmem %s0, %s223
        %p225 = scmp.lt.s32.totalorder %s22, 1
        %s226 = scalar_select %p225, %s22, 1
        %s227 = smul.addr %s226, 54
        %s228 = smul.addr %s227, 8
        %s229 = scalar_lea.vmem %s1, %s228
        %s230 = smul.u32 8, %s23
        %s231 = smul.u32 %s23, 8
        %s232 = smul.u32 %s231, 24
        %s233 = scalar_lea.vmem %s224, %s232
        %v234 = vld [vmem:[%s233] sm:$0xff]
        %v235 = vld [vmem:[%s233 + $0x8] sm:$0xff]
        %v236 = vld [vmem:[%s233 + $0x10] sm:$0x3]
        %v237 = vld [vmem:[%s233 + $0x18] sm:$0xff]
        %v238 = vld [vmem:[%s233 + $0x20] sm:$0xff]
        %v239 = vld [vmem:[%s233 + $0x28] sm:$0x3]
        %v240 = vld [vmem:[%s233 + $0x30] sm:$0xff]
        %v241 = vld [vmem:[%s233 + $0x38] sm:$0xff]
        %v242 = vld [vmem:[%s233 + $0x40] sm:$0x3]
        %v243 = vld [vmem:[%s233 + $0x48] sm:$0xff]
        %v244 = vld [vmem:[%s233 + $0x50] sm:$0xff]
        %v245 = vld [vmem:[%s233 + $0x58] sm:$0x3]
        %v246 = vld [vmem:[%s233 + $0x60] sm:$0xff]
        %v247 = vld [vmem:[%s233 + $0x68] sm:$0xff]
        %v248 = vld [vmem:[%s233 + $0x70] sm:$0x3]
        %v249 = vld [vmem:[%s233 + $0x78] sm:$0xff]
        %v250 = vld [vmem:[%s233 + $0x80] sm:$0xff]
        %v251 = vld [vmem:[%s233 + $0x88] sm:$0x3]
        %v252 = vld [vmem:[%s233 + $0x90] sm:$0xff]
        %v253 = vld [vmem:[%s233 + $0x98] sm:$0xff]
        %v254 = vld [vmem:[%s233 + $0xa0] sm:$0x3]
        %v255 = vld [vmem:[%s233 + $0xa8] sm:$0xff]
        %v256 = vld [vmem:[%s233 + $0xb0] sm:$0xff]
        %v257 = vld [vmem:[%s233 + $0xb8] sm:$0x3]
        %v258 = vld [vmem:[%s233 + $0xc0] sm:$0xff]
        %v259 = vld [vmem:[%s233 + $0xc8] sm:$0xff]
        %v260 = vld [vmem:[%s233 + $0xd0] sm:$0x3]
        %v261 = vld [vmem:[%s233 + $0xd8] sm:$0xff]
        %v262 = vld [vmem:[%s233 + $0xe0] sm:$0xff]
        %v263 = vld [vmem:[%s233 + $0xe8] sm:$0x3]
        %s264 = scalar_lea.vmem %s229, %s232
        %v265 = vld [vmem:[%s264] sm:$0xff]
        %v266 = vld [vmem:[%s264 + $0x8] sm:$0xff]
        %v267 = vld [vmem:[%s264 + $0x10] sm:$0x3]
        %v268 = vld [vmem:[%s264 + $0x18] sm:$0xff]
        %v269 = vld [vmem:[%s264 + $0x20] sm:$0xff]
        %v270 = vld [vmem:[%s264 + $0x28] sm:$0x3]
        %v271 = vld [vmem:[%s264 + $0x30] sm:$0xff]
        %v272 = vld [vmem:[%s264 + $0x38] sm:$0xff]
        %v273 = vld [vmem:[%s264 + $0x40] sm:$0x3]
        %v274 = vld [vmem:[%s264 + $0x48] sm:$0xff]
        %v275 = vld [vmem:[%s264 + $0x50] sm:$0xff]
        %v276 = vld [vmem:[%s264 + $0x58] sm:$0x3]
        %v277 = vld [vmem:[%s264 + $0x60] sm:$0xff]
        %v278 = vld [vmem:[%s264 + $0x68] sm:$0xff]
        %v279 = vld [vmem:[%s264 + $0x70] sm:$0x3]
        %v280 = vld [vmem:[%s264 + $0x78] sm:$0xff]
        %v281 = vld [vmem:[%s264 + $0x80] sm:$0xff]
        %v282 = vld [vmem:[%s264 + $0x88] sm:$0x3]
        %v283 = vld [vmem:[%s264 + $0x90] sm:$0xff]
        %v284 = vld [vmem:[%s264 + $0x98] sm:$0xff]
        %v285 = vld [vmem:[%s264 + $0xa0] sm:$0x3]
        %v286 = vld [vmem:[%s264 + $0xa8] sm:$0xff]
        %v287 = vld [vmem:[%s264 + $0xb0] sm:$0xff]
        %v288 = vld [vmem:[%s264 + $0xb8] sm:$0x3]
        %v289 = vld [vmem:[%s264 + $0xc0] sm:$0xff]
        %v290 = vld [vmem:[%s264 + $0xc8] sm:$0xff]
        %v291 = vld [vmem:[%s264 + $0xd0] sm:$0x3]
        %v292 = vld [vmem:[%s264 + $0xd8] sm:$0xff]
        %v293 = vld [vmem:[%s264 + $0xe0] sm:$0xff]
        %v294 = vld [vmem:[%s264 + $0xe8] sm:$0x3]
        %296 = vset.pattern.permute.xlu0 0
        %297 = vperm.xlu0 %296, %v265
        %v298 = vpop.permute.xlu0 %297
        %301 = vset.pattern.permute.xlu0 0
        %302 = vperm.xlu0 %301, %v266
        %v303 = vpop.permute.xlu0 %302
        %306 = vset.pattern.permute.xlu0 0
        %307 = vperm.xlu0 %306, %v267
        %v308 = vpop.permute.xlu0 %307
        %311 = vset.pattern.permute.xlu0 0
        %312 = vperm.xlu0 %311, %v268
        %v313 = vpop.permute.xlu0 %312
        %316 = vset.pattern.permute.xlu0 0
        %317 = vperm.xlu0 %316, %v269
        %v318 = vpop.permute.xlu0 %317
        %321 = vset.pattern.permute.xlu0 0
        %322 = vperm.xlu0 %321, %v270
        %v323 = vpop.permute.xlu0 %322
        %326 = vset.pattern.permute.xlu0 0
        %327 = vperm.xlu0 %326, %v271
        %v328 = vpop.permute.xlu0 %327
        %331 = vset.pattern.permute.xlu0 0
        %332 = vperm.xlu0 %331, %v272
        %v333 = vpop.permute.xlu0 %332
        %336 = vset.pattern.permute.xlu0 0
        %337 = vperm.xlu0 %336, %v273
        %v338 = vpop.permute.xlu0 %337
        %341 = vset.pattern.permute.xlu0 0
        %342 = vperm.xlu0 %341, %v274
        %v343 = vpop.permute.xlu0 %342
        %346 = vset.pattern.permute.xlu0 0
        %347 = vperm.xlu0 %346, %v275
        %v348 = vpop.permute.xlu0 %347
        %351 = vset.pattern.permute.xlu0 0
        %352 = vperm.xlu0 %351, %v276
        %v353 = vpop.permute.xlu0 %352
        %356 = vset.pattern.permute.xlu0 0
        %357 = vperm.xlu0 %356, %v277
        %v358 = vpop.permute.xlu0 %357
        %361 = vset.pattern.permute.xlu0 0
        %362 = vperm.xlu0 %361, %v278
        %v363 = vpop.permute.xlu0 %362
        %366 = vset.pattern.permute.xlu0 0
        %367 = vperm.xlu0 %366, %v279
        %v368 = vpop.permute.xlu0 %367
        %371 = vset.pattern.permute.xlu0 0
        %372 = vperm.xlu0 %371, %v280
        %v373 = vpop.permute.xlu0 %372
        %376 = vset.pattern.permute.xlu0 0
        %377 = vperm.xlu0 %376, %v281
        %v378 = vpop.permute.xlu0 %377
        %381 = vset.pattern.permute.xlu0 0
        %382 = vperm.xlu0 %381, %v282
        %v383 = vpop.permute.xlu0 %382
        %386 = vset.pattern.permute.xlu0 0
        %387 = vperm.xlu0 %386, %v283
        %v388 = vpop.permute.xlu0 %387
        %391 = vset.pattern.permute.xlu0 0
        %392 = vperm.xlu0 %391, %v284
        %v393 = vpop.permute.xlu0 %392
        %396 = vset.pattern.permute.xlu0 0
        %397 = vperm.xlu0 %396, %v285
        %v398 = vpop.permute.xlu0 %397
        %401 = vset.pattern.permute.xlu0 0
        %402 = vperm.xlu0 %401, %v286
        %v403 = vpop.permute.xlu0 %402
        %406 = vset.pattern.permute.xlu0 0
        %407 = vperm.xlu0 %406, %v287
        %v408 = vpop.permute.xlu0 %407
        %411 = vset.pattern.permute.xlu0 0
        %412 = vperm.xlu0 %411, %v288
        %v413 = vpop.permute.xlu0 %412
        %416 = vset.pattern.permute.xlu0 0
        %417 = vperm.xlu0 %416, %v289
        %v418 = vpop.permute.xlu0 %417
        %421 = vset.pattern.permute.xlu0 0
        %422 = vperm.xlu0 %421, %v290
        %v423 = vpop.permute.xlu0 %422
        %426 = vset.pattern.permute.xlu0 0
        %427 = vperm.xlu0 %426, %v291
        %v428 = vpop.permute.xlu0 %427
        %431 = vset.pattern.permute.xlu0 0
        %432 = vperm.xlu0 %431, %v292
        %v433 = vpop.permute.xlu0 %432
        %436 = vset.pattern.permute.xlu0 0
        %437 = vperm.xlu0 %436, %v293
        %v438 = vpop.permute.xlu0 %437
        %441 = vset.pattern.permute.xlu0 0
        %442 = vperm.xlu0 %441, %v294
        %v443 = vpop.permute.xlu0 %442
        %v445 = vmul.f32 %v234, %v298
        %v446 = vmul.f32 %v235, %v303
        %v447 = vmul.f32 %v236, %v308
        %v448 = vmul.f32 %v237, %v313
        %v449 = vmul.f32 %v238, %v318
        %v450 = vmul.f32 %v239, %v323
        %v451 = vmul.f32 %v240, %v328
        %v452 = vmul.f32 %v241, %v333
        %v453 = vmul.f32 %v242, %v338
        %v454 = vmul.f32 %v243, %v343
        %v455 = vmul.f32 %v244, %v348
        %v456 = vmul.f32 %v245, %v353
        %v457 = vmul.f32 %v246, %v358
        %v458 = vmul.f32 %v247, %v363
        %v459 = vmul.f32 %v248, %v368
        %v460 = vmul.f32 %v249, %v373
        %v461 = vmul.f32 %v250, %v378
        %v462 = vmul.f32 %v251, %v383
        %v463 = vmul.f32 %v252, %v388
        %v464 = vmul.f32 %v253, %v393
        %v465 = vmul.f32 %v254, %v398
        %v466 = vmul.f32 %v255, %v403
        %v467 = vmul.f32 %v256, %v408
        %v468 = vmul.f32 %v257, %v413
        %v469 = vmul.f32 %v258, %v418
        %v470 = vmul.f32 %v259, %v423
        %v471 = vmul.f32 %v260, %v428
        %v472 = vmul.f32 %v261, %v433
        %v473 = vmul.f32 %v262, %v438
        %v474 = vmul.f32 %v263, %v443
        %vm499 = vcmask 1046528
        %v500 = vrot.slane %v445, 1
        %v501 = vrot.slane %v446, 1
        %v502 = vsel %vm499, %v500, %v501
        %v503 = vrot.slane %v447, 1
        %v504 = vsel %vm499, %v501, %v503
        %v505 = vrot.slane %v448, 1
        %v506 = vrot.slane %v449, 1
        %v507 = vsel %vm499, %v505, %v506
        %v508 = vrot.slane %v450, 1
        %v509 = vsel %vm499, %v506, %v508
        %v510 = vrot.slane %v451, 1
        %v511 = vrot.slane %v452, 1
        %v512 = vsel %vm499, %v510, %v511
        %v513 = vrot.slane %v453, 1
        %v514 = vsel %vm499, %v511, %v513
        %v515 = vrot.slane %v454, 1
        %v516 = vrot.slane %v455, 1
        %v517 = vsel %vm499, %v515, %v516
        %v518 = vrot.slane %v456, 1
        %v519 = vsel %vm499, %v516, %v518
        %v520 = vrot.slane %v457, 1
        %v521 = vrot.slane %v458, 1
        %v522 = vsel %vm499, %v520, %v521
        %v523 = vrot.slane %v459, 1
        %v524 = vsel %vm499, %v521, %v523
        %v525 = vrot.slane %v460, 1
        %v526 = vrot.slane %v461, 1
        %v527 = vsel %vm499, %v525, %v526
        %v528 = vrot.slane %v462, 1
        %v529 = vsel %vm499, %v526, %v528
        %v530 = vrot.slane %v463, 1
        %v531 = vrot.slane %v464, 1
        %v532 = vsel %vm499, %v530, %v531
        %v533 = vrot.slane %v465, 1
        %v534 = vsel %vm499, %v531, %v533
        %v535 = vrot.slane %v466, 1
        %v536 = vrot.slane %v467, 1
        %v537 = vsel %vm499, %v535, %v536
        %v538 = vrot.slane %v468, 1
        %v539 = vsel %vm499, %v536, %v538
        %vm556 = vcmask 1045504
        %v557 = vrot.slane %v445, 2
        %v558 = vrot.slane %v446, 2
        %v559 = vsel %vm556, %v557, %v558
        %v560 = vrot.slane %v447, 2
        %v561 = vsel %vm556, %v558, %v560
        %v562 = vrot.slane %v448, 2
        %v563 = vrot.slane %v449, 2
        %v564 = vsel %vm556, %v562, %v563
        %v565 = vrot.slane %v450, 2
        %v566 = vsel %vm556, %v563, %v565
        %v567 = vrot.slane %v451, 2
        %v568 = vrot.slane %v452, 2
        %v569 = vsel %vm556, %v567, %v568
        %v570 = vrot.slane %v453, 2
        %v571 = vsel %vm556, %v568, %v570
        %v572 = vrot.slane %v454, 2
        %v573 = vrot.slane %v455, 2
        %v574 = vsel %vm556, %v572, %v573
        %v575 = vrot.slane %v456, 2
        %v576 = vsel %vm556, %v573, %v575
        %v577 = vrot.slane %v457, 2
        %v578 = vrot.slane %v458, 2
        %v579 = vsel %vm556, %v577, %v578
        %v580 = vrot.slane %v459, 2
        %v581 = vsel %vm556, %v578, %v580
        %v582 = vrot.slane %v460, 2
        %v583 = vrot.slane %v461, 2
        %v584 = vsel %vm556, %v582, %v583
        %v585 = vrot.slane %v462, 2
        %v586 = vsel %vm556, %v583, %v585
        %v587 = vrot.slane %v463, 2
        %v588 = vrot.slane %v464, 2
        %v589 = vsel %vm556, %v587, %v588
        %v590 = vrot.slane %v465, 2
        %v591 = vsel %vm556, %v588, %v590
        %v592 = vrot.slane %v466, 2
        %v593 = vrot.slane %v467, 2
        %v594 = vsel %vm556, %v592, %v593
        %v595 = vrot.slane %v468, 2
        %v596 = vsel %vm556, %v593, %v595
        %v616 = vrot.slane %v469, 1
        %v617 = vrot.slane %v470, 1
        %v618 = vsel %vm499, %v616, %v617
        %v619 = vrot.slane %v471, 1
        %v620 = vsel %vm499, %v617, %v619
        %v623 = vrot.slane %v469, 2
        %v624 = vrot.slane %v470, 2
        %v625 = vsel %vm556, %v623, %v624
        %v626 = vrot.slane %v471, 2
        %v627 = vsel %vm556, %v624, %v626
        %v633 = vrot.slane %v472, 1
        %v634 = vrot.slane %v473, 1
        %v635 = vsel %vm499, %v633, %v634
        %v636 = vrot.slane %v474, 1
        %v637 = vsel %vm499, %v634, %v636
        %v640 = vrot.slane %v472, 2
        %v641 = vrot.slane %v473, 2
        %v642 = vsel %vm556, %v640, %v641
        %v643 = vrot.slane %v474, 2
        %v644 = vsel %vm556, %v641, %v643
        %v647 = vld [vmem:[%s2] sm:$0xff]
        %v648 = vld [vmem:[%s2 + $0x8] sm:$0xff]
        %v649 = vld [vmem:[%s2 + $0x10] sm:$0xff]
        %v650 = vld [vmem:[%s2 + $0x18] sm:$0xff]
        %v651 = vld [vmem:[%s2 + $0x20] sm:$0xff]
        %v652 = vld [vmem:[%s2 + $0x28] sm:$0xff]
        %v653 = vld [vmem:[%s2 + $0x30] sm:$0xff]
        %v654 = vld [vmem:[%s2 + $0x38] sm:$0xff]
        %v655 = vld [vmem:[%s2 + $0x40] sm:$0xff]
        %v656 = vld [vmem:[%s2 + $0x48] sm:$0xff]
        %v657 = vld [vmem:[%s2 + $0x50] sm:$0xff]
        %v658 = vld [vmem:[%s2 + $0x58] sm:$0xff]
        %v659 = vld [vmem:[%s2 + $0x60] sm:$0xff]
        %v660 = vld [vmem:[%s2 + $0x68] sm:$0xff]
        %v661 = vld [vmem:[%s2 + $0x70] sm:$0xff]
        %v662 = vld [vmem:[%s2 + $0x78] sm:$0xff]
        %v663 = vld [vmem:[%s2 + $0x80] sm:$0xff]
        %v664 = vld [vmem:[%s2 + $0x88] sm:$0xff]
        %v665 = vld [vmem:[%s2 + $0x90] sm:$0xff]
        %v666 = vld [vmem:[%s2 + $0x98] sm:$0xff]
        %v667 = vld [vmem:[%s2 + $0xa0] sm:$0xff]
        %v668 = vld [vmem:[%s2 + $0xa8] sm:$0xff]
        %v669 = vld [vmem:[%s2 + $0xb0] sm:$0xff]
        %v670 = vld [vmem:[%s2 + $0xb8] sm:$0xff]
        %v671 = vld [vmem:[%s2 + $0xc0] sm:$0xff]
        %v672 = vld [vmem:[%s2 + $0xc8] sm:$0xff]
        %v673 = vld [vmem:[%s2 + $0xd0] sm:$0xff]
        %v674 = vld [vmem:[%s2 + $0xd8] sm:$0xff]
        %v675 = vld [vmem:[%s2 + $0xe0] sm:$0xff]
        %v676 = vld [vmem:[%s2 + $0xe8] sm:$0xff]
        %v677 = vld [vmem:[%s2 + $0xf0] sm:$0xff]
        %v678 = vld [vmem:[%s2 + $0xf8] sm:$0xff]
        %v679 = vld [vmem:[%s2 + $0x100] sm:$0xff]
        %v680 = vld [vmem:[%s2 + $0x108] sm:$0xff]
        %v681 = vld [vmem:[%s2 + $0x110] sm:$0xff]
        %v682 = vld [vmem:[%s2 + $0x118] sm:$0xff]
        %v683 = vld [vmem:[%s2 + $0x120] sm:$0xff]
        %v684 = vld [vmem:[%s2 + $0x128] sm:$0xff]
        %v685 = vld [vmem:[%s2 + $0x130] sm:$0xff]
        %v686 = vld [vmem:[%s2 + $0x138] sm:$0xff]
        %v687 = vld [vmem:[%s2 + $0x140] sm:$0xff]
        %v688 = vld [vmem:[%s2 + $0x148] sm:$0xff]
        %v689 = vld [vmem:[%s2 + $0x150] sm:$0xff]
        %v690 = vld [vmem:[%s2 + $0x158] sm:$0xff]
        %v691 = vld [vmem:[%s2 + $0x160] sm:$0xff]
        %v692 = vld [vmem:[%s2 + $0x168] sm:$0xff]
        %v693 = vld [vmem:[%s2 + $0x170] sm:$0xff]
        %v694 = vld [vmem:[%s2 + $0x178] sm:$0xff]
        %v695 = vld [vmem:[%s2 + $0x180] sm:$0xff]
        %v696 = vld [vmem:[%s2 + $0x188] sm:$0xff]
        %v697 = vld [vmem:[%s2 + $0x190] sm:$0xff]
        %v698 = vld [vmem:[%s2 + $0x198] sm:$0xff]
        %v699 = vld [vmem:[%s2 + $0x1a0] sm:$0xff]
        %v700 = vld [vmem:[%s2 + $0x1a8] sm:$0xff]
        %v701 = vld [vmem:[%s2 + $0x1b0] sm:$0xff]
        %v702 = vld [vmem:[%s2 + $0x1b8] sm:$0xff]
        %v703 = vld [vmem:[%s2 + $0x1c0] sm:$0xff]
        %v704 = vld [vmem:[%s2 + $0x1c8] sm:$0xff]
        %v705 = vld [vmem:[%s2 + $0x1d0] sm:$0xff]
        %v706 = vld [vmem:[%s2 + $0x1d8] sm:$0xff]
        %v707 = vld [vmem:[%s2 + $0x1e0] sm:$0xff]
        %v708 = vld [vmem:[%s2 + $0x1e8] sm:$0xff]
        %v709 = vld [vmem:[%s2 + $0x1f0] sm:$0xff]
        %v710 = vld [vmem:[%s2 + $0x1f8] sm:$0xff]
        %v711 = vld [vmem:[%s2 + $0x200] sm:$0xff]
        %v712 = vld [vmem:[%s2 + $0x208] sm:$0xff]
        %v713 = vld [vmem:[%s2 + $0x210] sm:$0xff]
        %v714 = vld [vmem:[%s2 + $0x218] sm:$0xff]
        %v715 = vld [vmem:[%s2 + $0x220] sm:$0xff]
        %v716 = vld [vmem:[%s2 + $0x228] sm:$0xff]
        %v717 = vld [vmem:[%s2 + $0x230] sm:$0xff]
        %v718 = vld [vmem:[%s2 + $0x238] sm:$0xff]
        %v719 = vld [vmem:[%s2 + $0x240] sm:$0xff]
        %v720 = vld [vmem:[%s2 + $0x248] sm:$0xff]
        %v721 = vld [vmem:[%s2 + $0x250] sm:$0xff]
        %v722 = vld [vmem:[%s2 + $0x258] sm:$0xff]
        %v723 = vld [vmem:[%s2 + $0x260] sm:$0xff]
        %v724 = vld [vmem:[%s2 + $0x268] sm:$0xff]
        %v725 = vld [vmem:[%s2 + $0x270] sm:$0xff]
        %v726 = vld [vmem:[%s2 + $0x278] sm:$0xff]
        %v727 = vld [vmem:[%s2 + $0x280] sm:$0xff]
        %v728 = vld [vmem:[%s2 + $0x288] sm:$0xff]
        %v729 = vld [vmem:[%s2 + $0x290] sm:$0xff]
        %v730 = vld [vmem:[%s2 + $0x298] sm:$0xff]
        %v731 = vld [vmem:[%s2 + $0x2a0] sm:$0xff]
        %v732 = vld [vmem:[%s2 + $0x2a8] sm:$0xff]
        %v733 = vld [vmem:[%s2 + $0x2b0] sm:$0xff]
        %v734 = vld [vmem:[%s2 + $0x2b8] sm:$0xff]
        %v735 = vld [vmem:[%s2 + $0x2c0] sm:$0xff]
        %v736 = vld [vmem:[%s2 + $0x2c8] sm:$0xff]
        %v737 = vld [vmem:[%s2 + $0x2d0] sm:$0xff]
        %v738 = vld [vmem:[%s2 + $0x2d8] sm:$0xff]
        %v739 = vld [vmem:[%s2 + $0x2e0] sm:$0xff]
        %v740 = vld [vmem:[%s2 + $0x2e8] sm:$0xff]
        %v741 = vld [vmem:[%s2 + $0x2f0] sm:$0xff]
        %v742 = vld [vmem:[%s2 + $0x2f8] sm:$0xff]
        %v743 = vld [vmem:[%s2 + $0x300] sm:$0xff]
        %v744 = vld [vmem:[%s2 + $0x308] sm:$0xff]
        %v745 = vld [vmem:[%s2 + $0x310] sm:$0xff]
        %v746 = vld [vmem:[%s2 + $0x318] sm:$0xff]
        %v747 = vld [vmem:[%s2 + $0x320] sm:$0xff]
        %v748 = vld [vmem:[%s2 + $0x328] sm:$0xff]
        %v749 = vld [vmem:[%s2 + $0x330] sm:$0xff]
        %v750 = vld [vmem:[%s2 + $0x338] sm:$0xff]
        %v751 = vld [vmem:[%s2 + $0x340] sm:$0xff]
        %v752 = vld [vmem:[%s2 + $0x348] sm:$0xff]
        %v753 = vld [vmem:[%s2 + $0x350] sm:$0xff]
        %v754 = vld [vmem:[%s2 + $0x358] sm:$0xff]
        %v755 = vld [vmem:[%s2 + $0x360] sm:$0xff]
        %v756 = vld [vmem:[%s2 + $0x368] sm:$0xff]
        %v757 = vld [vmem:[%s2 + $0x370] sm:$0xff]
        %v758 = vld [vmem:[%s2 + $0x378] sm:$0xff]
        %v759 = vld [vmem:[%s2 + $0x380] sm:$0xff]
        %v760 = vld [vmem:[%s2 + $0x388] sm:$0xff]
        %v761 = vld [vmem:[%s2 + $0x390] sm:$0xff]
        %v762 = vld [vmem:[%s2 + $0x398] sm:$0xff]
        %v763 = vld [vmem:[%s2 + $0x3a0] sm:$0xff]
        %v764 = vld [vmem:[%s2 + $0x3a8] sm:$0xff]
        %v765 = vld [vmem:[%s2 + $0x3b0] sm:$0xff]
        %v766 = vld [vmem:[%s2 + $0x3b8] sm:$0xff]
        %v767 = vld [vmem:[%s2 + $0x3c0] sm:$0xff]
        %v768 = vld [vmem:[%s2 + $0x3c8] sm:$0xff]
        %v769 = vld [vmem:[%s2 + $0x3d0] sm:$0xff]
        %v770 = vld [vmem:[%s2 + $0x3d8] sm:$0xff]
        %v771 = vld [vmem:[%s2 + $0x3e0] sm:$0xff]
        %v772 = vld [vmem:[%s2 + $0x3e8] sm:$0xff]
        %v773 = vld [vmem:[%s2 + $0x3f0] sm:$0xff]
        %v774 = vld [vmem:[%s2 + $0x3f8] sm:$0xff]
        %v775 = vld [vmem:[%s2 + $0x400] sm:$0xff]
        %v776 = vld [vmem:[%s2 + $0x408] sm:$0xff]
        %v777 = vld [vmem:[%s2 + $0x410] sm:$0xff]
        %v778 = vld [vmem:[%s2 + $0x418] sm:$0xff]
        %v779 = vld [vmem:[%s2 + $0x420] sm:$0xff]
        %v780 = vld [vmem:[%s2 + $0x428] sm:$0xff]
        %v781 = vld [vmem:[%s2 + $0x430] sm:$0xff]
        %v782 = vld [vmem:[%s2 + $0x438] sm:$0xff]
        %v783 = vld [vmem:[%s2 + $0x440] sm:$0xff]
        %v784 = vld [vmem:[%s2 + $0x448] sm:$0xff]
        %v785 = vld [vmem:[%s2 + $0x450] sm:$0xff]
        %v786 = vld [vmem:[%s2 + $0x458] sm:$0xff]
        %v787 = vld [vmem:[%s2 + $0x460] sm:$0xff]
        %v788 = vld [vmem:[%s2 + $0x468] sm:$0xff]
        %v789 = vld [vmem:[%s2 + $0x470] sm:$0xff]
        %v790 = vld [vmem:[%s2 + $0x478] sm:$0xff]
        %v791 = vld [vmem:[%s3] sm:$0x1]
        %v793 = vperm.slane %v791, 0
        %795 = vmatpush.msra.mxu0 %v662
        %796 = vmatpush.msra.mxu0 %v661
        %797 = vmatpush.msra.mxu0 %v660
        %798 = vmatpush.msra.mxu0 %v659
        %799 = vmatpush.msra.mxu0 %v658
        %800 = vmatpush.msra.mxu0 %v657
        %801 = vmatpush.msra.mxu0 %v656
        %802 = vmatpush.msra.mxu0 %v655
        %803 = vmatpush.msra.mxu0 %v654
        %804 = vmatpush.msra.mxu0 %v653
        %805 = vmatpush.msra.mxu0 %v652
        %806 = vmatpush.msra.mxu0 %v651
        %807 = vmatpush.msra.mxu0 %v650
        %808 = vmatpush.msra.mxu0 %v649
        %809 = vmatpush.msra.mxu0 %v648
        %810 = vmatpush.msra.mxu0 %v647
        %811 = vmatmul.f32.gmra.mxu0 %v445
        %v812 = vpop.f32.mrf.mxu0
        %v813 = vadd.f32 %v793, %v812
        %814 = vmatmul.f32.gmra.mxu0 %v446
        %v815 = vpop.f32.mrf.mxu0
        %v816 = vadd.f32 %v793, %v815
        %817 = vmatmul.f32.gmra.mxu0 %v448
        %v818 = vpop.f32.mrf.mxu0
        %v819 = vadd.f32 %v793, %v818
        %820 = vmatmul.f32.gmra.mxu0 %v449
        %v821 = vpop.f32.mrf.mxu0
        %v822 = vadd.f32 %v793, %v821
        %823 = vmatmul.f32.gmra.mxu0 %v451
        %v824 = vpop.f32.mrf.mxu0
        %v825 = vadd.f32 %v793, %v824
        %826 = vmatmul.f32.gmra.mxu0 %v452
        %v827 = vpop.f32.mrf.mxu0
        %v828 = vadd.f32 %v793, %v827
        %829 = vmatmul.f32.gmra.mxu0 %v454
        %v830 = vpop.f32.mrf.mxu0
        %v831 = vadd.f32 %v793, %v830
        %832 = vmatmul.f32.gmra.mxu0 %v455
        %v833 = vpop.f32.mrf.mxu0
        %v834 = vadd.f32 %v793, %v833
        %835 = vmatmul.f32.gmra.mxu0 %v457
        %v836 = vpop.f32.mrf.mxu0
        %v837 = vadd.f32 %v793, %v836
        %838 = vmatmul.f32.gmra.mxu0 %v458
        %v839 = vpop.f32.mrf.mxu0
        %v840 = vadd.f32 %v793, %v839
        %841 = vmatmul.f32.gmra.mxu0 %v460
        %v842 = vpop.f32.mrf.mxu0
        %v843 = vadd.f32 %v793, %v842
        %844 = vmatmul.f32.gmra.mxu0 %v461
        %v845 = vpop.f32.mrf.mxu0
        %v846 = vadd.f32 %v793, %v845
        %847 = vmatmul.f32.gmra.mxu0 %v463
        %v848 = vpop.f32.mrf.mxu0
        %v849 = vadd.f32 %v793, %v848
        %850 = vmatmul.f32.gmra.mxu0 %v464
        %v851 = vpop.f32.mrf.mxu0
        %v852 = vadd.f32 %v793, %v851
        %853 = vmatmul.f32.gmra.mxu0 %v466
        %v854 = vpop.f32.mrf.mxu0
        %v855 = vadd.f32 %v793, %v854
        %856 = vmatmul.f32.gmra.mxu0 %v467
        %v857 = vpop.f32.mrf.mxu0
        %v858 = vadd.f32 %v793, %v857
        %859 = vdwg.mxu0
        %860 = vmatpush.msra.mxu0 %v678
        %861 = vmatpush.msra.mxu0 %v677
        %862 = vmatpush.msra.mxu0 %v676
        %863 = vmatpush.msra.mxu0 %v675
        %864 = vmatpush.msra.mxu0 %v674
        %865 = vmatpush.msra.mxu0 %v673
        %866 = vmatpush.msra.mxu0 %v672
        %867 = vmatpush.msra.mxu0 %v671
        %868 = vmatpush.msra.mxu0 %v670
        %869 = vmatpush.msra.mxu0 %v669
        %870 = vmatpush.msra.mxu0 %v668
        %871 = vmatpush.msra.mxu0 %v667
        %872 = vmatpush.msra.mxu0 %v666
        %873 = vmatpush.msra.mxu0 %v665
        %874 = vmatpush.msra.mxu0 %v664
        %875 = vmatpush.msra.mxu0 %v663
        %876 = vmatmul.f32.gmra.mxu0 %v502
        %v877 = vpop.f32.mrf.mxu0
        %v878 = vadd.f32 %v813, %v877
        %879 = vmatmul.f32.gmra.mxu0 %v504
        %v880 = vpop.f32.mrf.mxu0
        %v881 = vadd.f32 %v816, %v880
        %882 = vmatmul.f32.gmra.mxu0 %v507
        %v883 = vpop.f32.mrf.mxu0
        %v884 = vadd.f32 %v819, %v883
        %885 = vmatmul.f32.gmra.mxu0 %v509
        %v886 = vpop.f32.mrf.mxu0
        %v887 = vadd.f32 %v822, %v886
        %888 = vmatmul.f32.gmra.mxu0 %v512
        %v889 = vpop.f32.mrf.mxu0
        %v890 = vadd.f32 %v825, %v889
        %891 = vmatmul.f32.gmra.mxu0 %v514
        %v892 = vpop.f32.mrf.mxu0
        %v893 = vadd.f32 %v828, %v892
        %894 = vmatmul.f32.gmra.mxu0 %v517
        %v895 = vpop.f32.mrf.mxu0
        %v896 = vadd.f32 %v831, %v895
        %897 = vmatmul.f32.gmra.mxu0 %v519
        %v898 = vpop.f32.mrf.mxu0
        %v899 = vadd.f32 %v834, %v898
        %900 = vmatmul.f32.gmra.mxu0 %v522
        %v901 = vpop.f32.mrf.mxu0
        %v902 = vadd.f32 %v837, %v901
        %903 = vmatmul.f32.gmra.mxu0 %v524
        %v904 = vpop.f32.mrf.mxu0
        %v905 = vadd.f32 %v840, %v904
        %906 = vmatmul.f32.gmra.mxu0 %v527
        %v907 = vpop.f32.mrf.mxu0
        %v908 = vadd.f32 %v843, %v907
        %909 = vmatmul.f32.gmra.mxu0 %v529
        %v910 = vpop.f32.mrf.mxu0
        %v911 = vadd.f32 %v846, %v910
        %912 = vmatmul.f32.gmra.mxu0 %v532
        %v913 = vpop.f32.mrf.mxu0
        %v914 = vadd.f32 %v849, %v913
        %915 = vmatmul.f32.gmra.mxu0 %v534
        %v916 = vpop.f32.mrf.mxu0
        %v917 = vadd.f32 %v852, %v916
        %918 = vmatmul.f32.gmra.mxu0 %v537
        %v919 = vpop.f32.mrf.mxu0
        %v920 = vadd.f32 %v855, %v919
        %921 = vmatmul.f32.gmra.mxu0 %v539
        %v922 = vpop.f32.mrf.mxu0
        %v923 = vadd.f32 %v858, %v922
        %924 = vdwg.mxu0
        %925 = vmatpush.msra.mxu0 %v694
        %926 = vmatpush.msra.mxu0 %v693
        %927 = vmatpush.msra.mxu0 %v692
        %928 = vmatpush.msra.mxu0 %v691
        %929 = vmatpush.msra.mxu0 %v690
        %930 = vmatpush.msra.mxu0 %v689
        %931 = vmatpush.msra.mxu0 %v688
        %932 = vmatpush.msra.mxu0 %v687
        %933 = vmatpush.msra.mxu0 %v686
        %934 = vmatpush.msra.mxu0 %v685
        %935 = vmatpush.msra.mxu0 %v684
        %936 = vmatpush.msra.mxu0 %v683
        %937 = vmatpush.msra.mxu0 %v682
        %938 = vmatpush.msra.mxu0 %v681
        %939 = vmatpush.msra.mxu0 %v680
        %940 = vmatpush.msra.mxu0 %v679
        %941 = vmatmul.f32.gmra.mxu0 %v559
        %v942 = vpop.f32.mrf.mxu0
        %v943 = vadd.f32 %v878, %v942
        %944 = vmatmul.f32.gmra.mxu0 %v561
        %v945 = vpop.f32.mrf.mxu0
        %v946 = vadd.f32 %v881, %v945
        %947 = vmatmul.f32.gmra.mxu0 %v564
        %v948 = vpop.f32.mrf.mxu0
        %v949 = vadd.f32 %v884, %v948
        %950 = vmatmul.f32.gmra.mxu0 %v566
        %v951 = vpop.f32.mrf.mxu0
        %v952 = vadd.f32 %v887, %v951
        %953 = vmatmul.f32.gmra.mxu0 %v569
        %v954 = vpop.f32.mrf.mxu0
        %v955 = vadd.f32 %v890, %v954
        %956 = vmatmul.f32.gmra.mxu0 %v571
        %v957 = vpop.f32.mrf.mxu0
        %v958 = vadd.f32 %v893, %v957
        %959 = vmatmul.f32.gmra.mxu0 %v574
        %v960 = vpop.f32.mrf.mxu0
        %v961 = vadd.f32 %v896, %v960
        %962 = vmatmul.f32.gmra.mxu0 %v576
        %v963 = vpop.f32.mrf.mxu0
        %v964 = vadd.f32 %v899, %v963
        %965 = vmatmul.f32.gmra.mxu0 %v579
        %v966 = vpop.f32.mrf.mxu0
        %v967 = vadd.f32 %v902, %v966
        %968 = vmatmul.f32.gmra.mxu0 %v581
        %v969 = vpop.f32.mrf.mxu0
        %v970 = vadd.f32 %v905, %v969
        %971 = vmatmul.f32.gmra.mxu0 %v584
        %v972 = vpop.f32.mrf.mxu0
        %v973 = vadd.f32 %v908, %v972
        %974 = vmatmul.f32.gmra.mxu0 %v586
        %v975 = vpop.f32.mrf.mxu0
        %v976 = vadd.f32 %v911, %v975
        %977 = vmatmul.f32.gmra.mxu0 %v589
        %v978 = vpop.f32.mrf.mxu0
        %v979 = vadd.f32 %v914, %v978
        %980 = vmatmul.f32.gmra.mxu0 %v591
        %v981 = vpop.f32.mrf.mxu0
        %v982 = vadd.f32 %v917, %v981
        %983 = vmatmul.f32.gmra.mxu0 %v594
        %v984 = vpop.f32.mrf.mxu0
        %v985 = vadd.f32 %v920, %v984
        %986 = vmatmul.f32.gmra.mxu0 %v596
        %v987 = vpop.f32.mrf.mxu0
        %v988 = vadd.f32 %v923, %v987
        %989 = vdwg.mxu0
        %990 = vmatpush.msra.mxu0 %v710
        %991 = vmatpush.msra.mxu0 %v709
        %992 = vmatpush.msra.mxu0 %v708
        %993 = vmatpush.msra.mxu0 %v707
        %994 = vmatpush.msra.mxu0 %v706
        %995 = vmatpush.msra.mxu0 %v705
        %996 = vmatpush.msra.mxu0 %v704
        %997 = vmatpush.msra.mxu0 %v703
        %998 = vmatpush.msra.mxu0 %v702
        %999 = vmatpush.msra.mxu0 %v701
        %1000 = vmatpush.msra.mxu0 %v700
        %1001 = vmatpush.msra.mxu0 %v699
        %1002 = vmatpush.msra.mxu0 %v698
        %1003 = vmatpush.msra.mxu0 %v697
        %1004 = vmatpush.msra.mxu0 %v696
        %1005 = vmatpush.msra.mxu0 %v695
        %1006 = vmatmul.f32.gmra.mxu0 %v448
        %v1007 = vpop.f32.mrf.mxu0
        %v1008 = vadd.f32 %v943, %v1007
        %1009 = vmatmul.f32.gmra.mxu0 %v449
        %v1010 = vpop.f32.mrf.mxu0
        %v1011 = vadd.f32 %v946, %v1010
        %1012 = vmatmul.f32.gmra.mxu0 %v451
        %v1013 = vpop.f32.mrf.mxu0
        %v1014 = vadd.f32 %v949, %v1013
        %1015 = vmatmul.f32.gmra.mxu0 %v452
        %v1016 = vpop.f32.mrf.mxu0
        %v1017 = vadd.f32 %v952, %v1016
        %1018 = vmatmul.f32.gmra.mxu0 %v454
        %v1019 = vpop.f32.mrf.mxu0
        %v1020 = vadd.f32 %v955, %v1019
        %1021 = vmatmul.f32.gmra.mxu0 %v455
        %v1022 = vpop.f32.mrf.mxu0
        %v1023 = vadd.f32 %v958, %v1022
        %1024 = vmatmul.f32.gmra.mxu0 %v457
        %v1025 = vpop.f32.mrf.mxu0
        %v1026 = vadd.f32 %v961, %v1025
        %1027 = vmatmul.f32.gmra.mxu0 %v458
        %v1028 = vpop.f32.mrf.mxu0
        %v1029 = vadd.f32 %v964, %v1028
        %1030 = vmatmul.f32.gmra.mxu0 %v460
        %v1031 = vpop.f32.mrf.mxu0
        %v1032 = vadd.f32 %v967, %v1031
        %1033 = vmatmul.f32.gmra.mxu0 %v461
        %v1034 = vpop.f32.mrf.mxu0
        %v1035 = vadd.f32 %v970, %v1034
        %1036 = vmatmul.f32.gmra.mxu0 %v463
        %v1037 = vpop.f32.mrf.mxu0
        %v1038 = vadd.f32 %v973, %v1037
        %1039 = vmatmul.f32.gmra.mxu0 %v464
        %v1040 = vpop.f32.mrf.mxu0
        %v1041 = vadd.f32 %v976, %v1040
        %1042 = vmatmul.f32.gmra.mxu0 %v466
        %v1043 = vpop.f32.mrf.mxu0
        %v1044 = vadd.f32 %v979, %v1043
        %1045 = vmatmul.f32.gmra.mxu0 %v467
        %v1046 = vpop.f32.mrf.mxu0
        %v1047 = vadd.f32 %v982, %v1046
        %1048 = vmatmul.f32.gmra.mxu0 %v469
        %v1049 = vpop.f32.mrf.mxu0
        %v1050 = vadd.f32 %v985, %v1049
        %1051 = vmatmul.f32.gmra.mxu0 %v470
        %v1052 = vpop.f32.mrf.mxu0
        %v1053 = vadd.f32 %v988, %v1052
        %1054 = vdwg.mxu0
        %1055 = vmatpush.msra.mxu0 %v726
        %1056 = vmatpush.msra.mxu0 %v725
        %1057 = vmatpush.msra.mxu0 %v724
        %1058 = vmatpush.msra.mxu0 %v723
        %1059 = vmatpush.msra.mxu0 %v722
        %1060 = vmatpush.msra.mxu0 %v721
        %1061 = vmatpush.msra.mxu0 %v720
        %1062 = vmatpush.msra.mxu0 %v719
        %1063 = vmatpush.msra.mxu0 %v718
        %1064 = vmatpush.msra.mxu0 %v717
        %1065 = vmatpush.msra.mxu0 %v716
        %1066 = vmatpush.msra.mxu0 %v715
        %1067 = vmatpush.msra.mxu0 %v714
        %1068 = vmatpush.msra.mxu0 %v713
        %1069 = vmatpush.msra.mxu0 %v712
        %1070 = vmatpush.msra.mxu0 %v711
        %1071 = vmatmul.f32.gmra.mxu0 %v507
        %v1072 = vpop.f32.mrf.mxu0
        %v1073 = vadd.f32 %v1008, %v1072
        %1074 = vmatmul.f32.gmra.mxu0 %v509
        %v1075 = vpop.f32.mrf.mxu0
        %v1076 = vadd.f32 %v1011, %v1075
        %1077 = vmatmul.f32.gmra.mxu0 %v512
        %v1078 = vpop.f32.mrf.mxu0
        %v1079 = vadd.f32 %v1014, %v1078
        %1080 = vmatmul.f32.gmra.mxu0 %v514
        %v1081 = vpop.f32.mrf.mxu0
        %v1082 = vadd.f32 %v1017, %v1081
        %1083 = vmatmul.f32.gmra.mxu0 %v517
        %v1084 = vpop.f32.mrf.mxu0
        %v1085 = vadd.f32 %v1020, %v1084
        %1086 = vmatmul.f32.gmra.mxu0 %v519
        %v1087 = vpop.f32.mrf.mxu0
        %v1088 = vadd.f32 %v1023, %v1087
        %1089 = vmatmul.f32.gmra.mxu0 %v522
        %v1090 = vpop.f32.mrf.mxu0
        %v1091 = vadd.f32 %v1026, %v1090
        %1092 = vmatmul.f32.gmra.mxu0 %v524
        %v1093 = vpop.f32.mrf.mxu0
        %v1094 = vadd.f32 %v1029, %v1093
        %1095 = vmatmul.f32.gmra.mxu0 %v527
        %v1096 = vpop.f32.mrf.mxu0
        %v1097 = vadd.f32 %v1032, %v1096
        %1098 = vmatmul.f32.gmra.mxu0 %v529
        %v1099 = vpop.f32.mrf.mxu0
        %v1100 = vadd.f32 %v1035, %v1099
        %1101 = vmatmul.f32.gmra.mxu0 %v532
        %v1102 = vpop.f32.mrf.mxu0
        %v1103 = vadd.f32 %v1038, %v1102
        %1104 = vmatmul.f32.gmra.mxu0 %v534
        %v1105 = vpop.f32.mrf.mxu0
        %v1106 = vadd.f32 %v1041, %v1105
        %1107 = vmatmul.f32.gmra.mxu0 %v537
        %v1108 = vpop.f32.mrf.mxu0
        %v1109 = vadd.f32 %v1044, %v1108
        %1110 = vmatmul.f32.gmra.mxu0 %v539
        %v1111 = vpop.f32.mrf.mxu0
        %v1112 = vadd.f32 %v1047, %v1111
        %1113 = vmatmul.f32.gmra.mxu0 %v618
        %v1114 = vpop.f32.mrf.mxu0
        %v1115 = vadd.f32 %v1050, %v1114
        %1116 = vmatmul.f32.gmra.mxu0 %v620
        %v1117 = vpop.f32.mrf.mxu0
        %v1118 = vadd.f32 %v1053, %v1117
        %1119 = vdwg.mxu0
        %1120 = vmatpush.msra.mxu0 %v742
        %1121 = vmatpush.msra.mxu0 %v741
        %1122 = vmatpush.msra.mxu0 %v740
        %1123 = vmatpush.msra.mxu0 %v739
        %1124 = vmatpush.msra.mxu0 %v738
        %1125 = vmatpush.msra.mxu0 %v737
        %1126 = vmatpush.msra.mxu0 %v736
        %1127 = vmatpush.msra.mxu0 %v735
        %1128 = vmatpush.msra.mxu0 %v734
        %1129 = vmatpush.msra.mxu0 %v733
        %1130 = vmatpush.msra.mxu0 %v732
        %1131 = vmatpush.msra.mxu0 %v731
        %1132 = vmatpush.msra.mxu0 %v730
        %1133 = vmatpush.msra.mxu0 %v729
        %1134 = vmatpush.msra.mxu0 %v728
        %1135 = vmatpush.msra.mxu0 %v727
        %1136 = vmatmul.f32.gmra.mxu0 %v564
        %v1137 = vpop.f32.mrf.mxu0
        %v1138 = vadd.f32 %v1073, %v1137
        %1139 = vmatmul.f32.gmra.mxu0 %v566
        %v1140 = vpop.f32.mrf.mxu0
        %v1141 = vadd.f32 %v1076, %v1140
        %1142 = vmatmul.f32.gmra.mxu0 %v569
        %v1143 = vpop.f32.mrf.mxu0
        %v1144 = vadd.f32 %v1079, %v1143
        %1145 = vmatmul.f32.gmra.mxu0 %v571
        %v1146 = vpop.f32.mrf.mxu0
        %v1147 = vadd.f32 %v1082, %v1146
        %1148 = vmatmul.f32.gmra.mxu0 %v574
        %v1149 = vpop.f32.mrf.mxu0
        %v1150 = vadd.f32 %v1085, %v1149
        %1151 = vmatmul.f32.gmra.mxu0 %v576
        %v1152 = vpop.f32.mrf.mxu0
        %v1153 = vadd.f32 %v1088, %v1152
        %1154 = vmatmul.f32.gmra.mxu0 %v579
        %v1155 = vpop.f32.mrf.mxu0
        %v1156 = vadd.f32 %v1091, %v1155
        %1157 = vmatmul.f32.gmra.mxu0 %v581
        %v1158 = vpop.f32.mrf.mxu0
        %v1159 = vadd.f32 %v1094, %v1158
        %1160 = vmatmul.f32.gmra.mxu0 %v584
        %v1161 = vpop.f32.mrf.mxu0
        %v1162 = vadd.f32 %v1097, %v1161
        %1163 = vmatmul.f32.gmra.mxu0 %v586
        %v1164 = vpop.f32.mrf.mxu0
        %v1165 = vadd.f32 %v1100, %v1164
        %1166 = vmatmul.f32.gmra.mxu0 %v589
        %v1167 = vpop.f32.mrf.mxu0
        %v1168 = vadd.f32 %v1103, %v1167
        %1169 = vmatmul.f32.gmra.mxu0 %v591
        %v1170 = vpop.f32.mrf.mxu0
        %v1171 = vadd.f32 %v1106, %v1170
        %1172 = vmatmul.f32.gmra.mxu0 %v594
        %v1173 = vpop.f32.mrf.mxu0
        %v1174 = vadd.f32 %v1109, %v1173
        %1175 = vmatmul.f32.gmra.mxu0 %v596
        %v1176 = vpop.f32.mrf.mxu0
        %v1177 = vadd.f32 %v1112, %v1176
        %1178 = vmatmul.f32.gmra.mxu0 %v625
        %v1179 = vpop.f32.mrf.mxu0
        %v1180 = vadd.f32 %v1115, %v1179
        %1181 = vmatmul.f32.gmra.mxu0 %v627
        %v1182 = vpop.f32.mrf.mxu0
        %v1183 = vadd.f32 %v1118, %v1182
        %1184 = vdwg.mxu0
        %1185 = vmatpush.msra.mxu0 %v758
        %1186 = vmatpush.msra.mxu0 %v757
        %1187 = vmatpush.msra.mxu0 %v756
        %1188 = vmatpush.msra.mxu0 %v755
        %1189 = vmatpush.msra.mxu0 %v754
        %1190 = vmatpush.msra.mxu0 %v753
        %1191 = vmatpush.msra.mxu0 %v752
        %1192 = vmatpush.msra.mxu0 %v751
        %1193 = vmatpush.msra.mxu0 %v750
        %1194 = vmatpush.msra.mxu0 %v749
        %1195 = vmatpush.msra.mxu0 %v748
        %1196 = vmatpush.msra.mxu0 %v747
        %1197 = vmatpush.msra.mxu0 %v746
        %1198 = vmatpush.msra.mxu0 %v745
        %1199 = vmatpush.msra.mxu0 %v744
        %1200 = vmatpush.msra.mxu0 %v743
        %1201 = vmatmul.f32.gmra.mxu0 %v451
        %v1202 = vpop.f32.mrf.mxu0
        %v1203 = vadd.f32 %v1138, %v1202
        %1204 = vmatmul.f32.gmra.mxu0 %v452
        %v1205 = vpop.f32.mrf.mxu0
        %v1206 = vadd.f32 %v1141, %v1205
        %1207 = vmatmul.f32.gmra.mxu0 %v454
        %v1208 = vpop.f32.mrf.mxu0
        %v1209 = vadd.f32 %v1144, %v1208
        %1210 = vmatmul.f32.gmra.mxu0 %v455
        %v1211 = vpop.f32.mrf.mxu0
        %v1212 = vadd.f32 %v1147, %v1211
        %1213 = vmatmul.f32.gmra.mxu0 %v457
        %v1214 = vpop.f32.mrf.mxu0
        %v1215 = vadd.f32 %v1150, %v1214
        %1216 = vmatmul.f32.gmra.mxu0 %v458
        %v1217 = vpop.f32.mrf.mxu0
        %v1218 = vadd.f32 %v1153, %v1217
        %1219 = vmatmul.f32.gmra.mxu0 %v460
        %v1220 = vpop.f32.mrf.mxu0
        %v1221 = vadd.f32 %v1156, %v1220
        %1222 = vmatmul.f32.gmra.mxu0 %v461
        %v1223 = vpop.f32.mrf.mxu0
        %v1224 = vadd.f32 %v1159, %v1223
        %1225 = vmatmul.f32.gmra.mxu0 %v463
        %v1226 = vpop.f32.mrf.mxu0
        %v1227 = vadd.f32 %v1162, %v1226
        %1228 = vmatmul.f32.gmra.mxu0 %v464
        %v1229 = vpop.f32.mrf.mxu0
        %v1230 = vadd.f32 %v1165, %v1229
        %1231 = vmatmul.f32.gmra.mxu0 %v466
        %v1232 = vpop.f32.mrf.mxu0
        %v1233 = vadd.f32 %v1168, %v1232
        %1234 = vmatmul.f32.gmra.mxu0 %v467
        %v1235 = vpop.f32.mrf.mxu0
        %v1236 = vadd.f32 %v1171, %v1235
        %1237 = vmatmul.f32.gmra.mxu0 %v469
        %v1238 = vpop.f32.mrf.mxu0
        %v1239 = vadd.f32 %v1174, %v1238
        %1240 = vmatmul.f32.gmra.mxu0 %v470
        %v1241 = vpop.f32.mrf.mxu0
        %v1242 = vadd.f32 %v1177, %v1241
        %1243 = vmatmul.f32.gmra.mxu0 %v472
        %v1244 = vpop.f32.mrf.mxu0
        %v1245 = vadd.f32 %v1180, %v1244
        %1246 = vmatmul.f32.gmra.mxu0 %v473
        %v1247 = vpop.f32.mrf.mxu0
        %v1248 = vadd.f32 %v1183, %v1247
        %1249 = vdwg.mxu0
        %1250 = vmatpush.msra.mxu0 %v774
        %1251 = vmatpush.msra.mxu0 %v773
        %1252 = vmatpush.msra.mxu0 %v772
        %1253 = vmatpush.msra.mxu0 %v771
        %1254 = vmatpush.msra.mxu0 %v770
        %1255 = vmatpush.msra.mxu0 %v769
        %1256 = vmatpush.msra.mxu0 %v768
        %1257 = vmatpush.msra.mxu0 %v767
        %1258 = vmatpush.msra.mxu0 %v766
        %1259 = vmatpush.msra.mxu0 %v765
        %1260 = vmatpush.msra.mxu0 %v764
        %1261 = vmatpush.msra.mxu0 %v763
        %1262 = vmatpush.msra.mxu0 %v762
        %1263 = vmatpush.msra.mxu0 %v761
        %1264 = vmatpush.msra.mxu0 %v760
        %1265 = vmatpush.msra.mxu0 %v759
        %1266 = vmatmul.f32.gmra.mxu0 %v512
        %v1267 = vpop.f32.mrf.mxu0
        %v1268 = vadd.f32 %v1203, %v1267
        %1269 = vmatmul.f32.gmra.mxu0 %v514
        %v1270 = vpop.f32.mrf.mxu0
        %v1271 = vadd.f32 %v1206, %v1270
        %1272 = vmatmul.f32.gmra.mxu0 %v517
        %v1273 = vpop.f32.mrf.mxu0
        %v1274 = vadd.f32 %v1209, %v1273
        %1275 = vmatmul.f32.gmra.mxu0 %v519
        %v1276 = vpop.f32.mrf.mxu0
        %v1277 = vadd.f32 %v1212, %v1276
        %1278 = vmatmul.f32.gmra.mxu0 %v522
        %v1279 = vpop.f32.mrf.mxu0
        %v1280 = vadd.f32 %v1215, %v1279
        %1281 = vmatmul.f32.gmra.mxu0 %v524
        %v1282 = vpop.f32.mrf.mxu0
        %v1283 = vadd.f32 %v1218, %v1282
        %1284 = vmatmul.f32.gmra.mxu0 %v527
        %v1285 = vpop.f32.mrf.mxu0
        %v1286 = vadd.f32 %v1221, %v1285
        %1287 = vmatmul.f32.gmra.mxu0 %v529
        %v1288 = vpop.f32.mrf.mxu0
        %v1289 = vadd.f32 %v1224, %v1288
        %1290 = vmatmul.f32.gmra.mxu0 %v532
        %v1291 = vpop.f32.mrf.mxu0
        %v1292 = vadd.f32 %v1227, %v1291
        %1293 = vmatmul.f32.gmra.mxu0 %v534
        %v1294 = vpop.f32.mrf.mxu0
        %v1295 = vadd.f32 %v1230, %v1294
        %1296 = vmatmul.f32.gmra.mxu0 %v537
        %v1297 = vpop.f32.mrf.mxu0
        %v1298 = vadd.f32 %v1233, %v1297
        %1299 = vmatmul.f32.gmra.mxu0 %v539
        %v1300 = vpop.f32.mrf.mxu0
        %v1301 = vadd.f32 %v1236, %v1300
        %1302 = vmatmul.f32.gmra.mxu0 %v618
        %v1303 = vpop.f32.mrf.mxu0
        %v1304 = vadd.f32 %v1239, %v1303
        %1305 = vmatmul.f32.gmra.mxu0 %v620
        %v1306 = vpop.f32.mrf.mxu0
        %v1307 = vadd.f32 %v1242, %v1306
        %1308 = vmatmul.f32.gmra.mxu0 %v635
        %v1309 = vpop.f32.mrf.mxu0
        %v1310 = vadd.f32 %v1245, %v1309
        %1311 = vmatmul.f32.gmra.mxu0 %v637
        %v1312 = vpop.f32.mrf.mxu0
        %v1313 = vadd.f32 %v1248, %v1312
        %1314 = vdwg.mxu0
        %1315 = vmatpush.msra.mxu0 %v790
        %1316 = vmatpush.msra.mxu0 %v789
        %1317 = vmatpush.msra.mxu0 %v788
        %1318 = vmatpush.msra.mxu0 %v787
        %1319 = vmatpush.msra.mxu0 %v786
        %1320 = vmatpush.msra.mxu0 %v785
        %1321 = vmatpush.msra.mxu0 %v784
        %1322 = vmatpush.msra.mxu0 %v783
        %1323 = vmatpush.msra.mxu0 %v782
        %1324 = vmatpush.msra.mxu0 %v781
        %1325 = vmatpush.msra.mxu0 %v780
        %1326 = vmatpush.msra.mxu0 %v779
        %1327 = vmatpush.msra.mxu0 %v778
        %1328 = vmatpush.msra.mxu0 %v777
        %1329 = vmatpush.msra.mxu0 %v776
        %1330 = vmatpush.msra.mxu0 %v775
        %1331 = vmatmul.f32.gmra.mxu0 %v569
        %v1332 = vpop.f32.mrf.mxu0
        %v1333 = vadd.f32 %v1268, %v1332
        %1334 = vmatmul.f32.gmra.mxu0 %v571
        %v1335 = vpop.f32.mrf.mxu0
        %v1336 = vadd.f32 %v1271, %v1335
        %1337 = vmatmul.f32.gmra.mxu0 %v574
        %v1338 = vpop.f32.mrf.mxu0
        %v1339 = vadd.f32 %v1274, %v1338
        %1340 = vmatmul.f32.gmra.mxu0 %v576
        %v1341 = vpop.f32.mrf.mxu0
        %v1342 = vadd.f32 %v1277, %v1341
        %1343 = vmatmul.f32.gmra.mxu0 %v579
        %v1344 = vpop.f32.mrf.mxu0
        %v1345 = vadd.f32 %v1280, %v1344
        %1346 = vmatmul.f32.gmra.mxu0 %v581
        %v1347 = vpop.f32.mrf.mxu0
        %v1348 = vadd.f32 %v1283, %v1347
        %1349 = vmatmul.f32.gmra.mxu0 %v584
        %v1350 = vpop.f32.mrf.mxu0
        %v1351 = vadd.f32 %v1286, %v1350
        %1352 = vmatmul.f32.gmra.mxu0 %v586
        %v1353 = vpop.f32.mrf.mxu0
        %v1354 = vadd.f32 %v1289, %v1353
        %1355 = vmatmul.f32.gmra.mxu0 %v589
        %v1356 = vpop.f32.mrf.mxu0
        %v1357 = vadd.f32 %v1292, %v1356
        %1358 = vmatmul.f32.gmra.mxu0 %v591
        %v1359 = vpop.f32.mrf.mxu0
        %v1360 = vadd.f32 %v1295, %v1359
        %1361 = vmatmul.f32.gmra.mxu0 %v594
        %v1362 = vpop.f32.mrf.mxu0
        %v1363 = vadd.f32 %v1298, %v1362
        %1364 = vmatmul.f32.gmra.mxu0 %v596
        %v1365 = vpop.f32.mrf.mxu0
        %v1366 = vadd.f32 %v1301, %v1365
        %1367 = vmatmul.f32.gmra.mxu0 %v625
        %v1368 = vpop.f32.mrf.mxu0
        %v1369 = vadd.f32 %v1304, %v1368
        %1370 = vmatmul.f32.gmra.mxu0 %v627
        %v1371 = vpop.f32.mrf.mxu0
        %v1372 = vadd.f32 %v1307, %v1371
        %1373 = vmatmul.f32.gmra.mxu0 %v642
        %v1374 = vpop.f32.mrf.mxu0
        %v1375 = vadd.f32 %v1310, %v1374
        %1376 = vmatmul.f32.gmra.mxu0 %v644
        %v1377 = vpop.f32.mrf.mxu0
        %v1378 = vadd.f32 %v1313, %v1377
        %1379 = vdwg.mxu0
        %v1404 = vrot.slane %v237, 1
        %v1405 = vrot.slane %v238, 1
        %v1406 = vsel %vm499, %v1404, %v1405
        %v1407 = vrot.slane %v239, 1
        %v1408 = vsel %vm499, %v1405, %v1407
        %v1409 = vrot.slane %v240, 1
        %v1410 = vrot.slane %v241, 1
        %v1411 = vsel %vm499, %v1409, %v1410
        %v1412 = vrot.slane %v242, 1
        %v1413 = vsel %vm499, %v1410, %v1412
        %v1414 = vrot.slane %v243, 1
        %v1415 = vrot.slane %v244, 1
        %v1416 = vsel %vm499, %v1414, %v1415
        %v1417 = vrot.slane %v245, 1
        %v1418 = vsel %vm499, %v1415, %v1417
        %v1419 = vrot.slane %v246, 1
        %v1420 = vrot.slane %v247, 1
        %v1421 = vsel %vm499, %v1419, %v1420
        %v1422 = vrot.slane %v248, 1
        %v1423 = vsel %vm499, %v1420, %v1422
        %v1424 = vrot.slane %v249, 1
        %v1425 = vrot.slane %v250, 1
        %v1426 = vsel %vm499, %v1424, %v1425
        %v1427 = vrot.slane %v251, 1
        %v1428 = vsel %vm499, %v1425, %v1427
        %v1429 = vrot.slane %v252, 1
        %v1430 = vrot.slane %v253, 1
        %v1431 = vsel %vm499, %v1429, %v1430
        %v1432 = vrot.slane %v254, 1
        %v1433 = vsel %vm499, %v1430, %v1432
        %v1434 = vrot.slane %v255, 1
        %v1435 = vrot.slane %v256, 1
        %v1436 = vsel %vm499, %v1434, %v1435
        %v1437 = vrot.slane %v257, 1
        %v1438 = vsel %vm499, %v1435, %v1437
        %v1439 = vrot.slane %v258, 1
        %v1440 = vrot.slane %v259, 1
        %v1441 = vsel %vm499, %v1439, %v1440
        %v1442 = vrot.slane %v260, 1
        %v1443 = vsel %vm499, %v1440, %v1442
        %v1460 = vadd.f32 %v1333, %v1406
        %v1461 = vadd.f32 %v1336, %v1408
        %v1462 = vadd.f32 %v1339, %v1411
        %v1463 = vadd.f32 %v1342, %v1413
        %v1464 = vadd.f32 %v1345, %v1416
        %v1465 = vadd.f32 %v1348, %v1418
        %v1466 = vadd.f32 %v1351, %v1421
        %v1467 = vadd.f32 %v1354, %v1423
        %v1468 = vadd.f32 %v1357, %v1426
        %v1469 = vadd.f32 %v1360, %v1428
        %v1470 = vadd.f32 %v1363, %v1431
        %v1471 = vadd.f32 %v1366, %v1433
        %v1472 = vadd.f32 %v1369, %v1436
        %v1473 = vadd.f32 %v1372, %v1438
        %v1474 = vadd.f32 %v1375, %v1441
        %v1475 = vadd.f32 %v1378, %v1443
        %1476 = vst [vmem:[%s219] sm:$0xff] %v1460
        %1477 = vst [vmem:[%s219 + $0x8] sm:$0xff] %v1461
        %1478 = vst [vmem:[%s219 + $0x10] sm:$0xff] %v1462
        %1479 = vst [vmem:[%s219 + $0x18] sm:$0xff] %v1463
        %1480 = vst [vmem:[%s219 + $0x20] sm:$0xff] %v1464
        %1481 = vst [vmem:[%s219 + $0x28] sm:$0xff] %v1465
        %1482 = vst [vmem:[%s219 + $0x30] sm:$0xff] %v1466
        %1483 = vst [vmem:[%s219 + $0x38] sm:$0xff] %v1467
        %1484 = vst [vmem:[%s219 + $0x40] sm:$0xff] %v1468
        %1485 = vst [vmem:[%s219 + $0x48] sm:$0xff] %v1469
        %1486 = vst [vmem:[%s219 + $0x50] sm:$0xff] %v1470
        %1487 = vst [vmem:[%s219 + $0x58] sm:$0xff] %v1471
        %1488 = vst [vmem:[%s219 + $0x60] sm:$0xff] %v1472
        %1489 = vst [vmem:[%s219 + $0x68] sm:$0xff] %v1473
        %1490 = vst [vmem:[%s219 + $0x70] sm:$0xff] %v1474
        %1491 = vst [vmem:[%s219 + $0x78] sm:$0xff] %v1475
        %s1492 = sand.u32 %s134, 1
        %s1493 = scalar_lea.sflag [#allocation3], %s1492
        %s1494 = sand.u32 %s134, 1
        %s1495 = smul.addr %s1494, 128
        %s1496 = scalar_lea.vmem [#allocation2], %s1495
        // Predicated region
        $region37: #{tpu_custom_call.1} parent=35 // pred_check
          %p1497 = pneg %p144
        $region38: #{tpu_custom_call.1} parent=35 // pred_check_branch
          %1499 = sbr.rel (%p1497) target = $region40
        $region39: #{tpu_custom_call.1} parent=35 // pred_region
          %s1500 = smul.u32 8, %s23
          %1502 = vsyncadd %s1493, 0
          %s1503 = smul.addr %s1500, 2
          %s1504 = smul.addr %s22, 32
          %s1505 = sadd.s32 %s1503, %s1504
          %s1506 = smul.addr %s1505, 8
          %s1507 = scalar_lea.hbm %s4, %s1506
          %s1508 = sshll.u32 %s1496, 4
          %s1509 = int_to_ptr.vmem [resolvable:$true] %s1508
          %s1510 = sshll.u32 %s1507, 4
          %s1511 = int_to_ptr.hbm [resolvable:$true] %s1510
          %1516 = dma.vmem_to_hbm [thread:$0]  %s1509, 2048, %s1511, %s1493, 128, 128, 8
        $region40: #{tpu_custom_call.1} parent=35 // pred_fallthru
          _
      $region36: #{tpu_custom_call.1} parent=5 // pred_fallthru
        _
      %p1517 = scmp.le.s32.totalorder 2, %s13
      // Predicated region
      $region41: #{tpu_custom_call.1} parent=5 // pred_check
        %p1518 = pneg %p1517
      $region42: #{tpu_custom_call.1} parent=5 // pred_check_branch
        %1520 = sbr.rel (%p1518) target = $region44
      $region43: #{tpu_custom_call.1} parent=5 // pred_region
        %s1521 = ssub.s32 %s13, 2
        // Predicated region
        $region45: #{tpu_custom_call.1} parent=43 // pred_check
          %p1522 = pneg %p150
        $region46: #{tpu_custom_call.1} parent=43 // pred_check_branch
          %1524 = sbr.rel (%p1522) target = $region48
        $region47: #{tpu_custom_call.1} parent=43 // pred_region
          %s1525 = sand.u32 %s135, 1
          %s1526 = scalar_lea.sflag [#allocation3], %s1525
          %s1527 = sand.u32 %s135, 1
          %s1528 = smul.addr %s1527, 128
          %s1529 = scalar_lea.vmem [#allocation2], %s1528
          %1531 = dma.done %s1526, 2048
        $region48: #{tpu_custom_call.1} parent=43 // pred_fallthru
          _
      $region44: #{tpu_custom_call.1} parent=5 // pred_fallthru
        _
    $region6: #{tpu_custom_call.1} parent=1 // loop_footer
      %s17 = sadd.s32 1, %s13
    $region7: #{tpu_custom_call.1} parent=1 // loop_footer_branch
      %12 = sbr.rel target = $region3
    $region8: #{tpu_custom_call.1} parent=1 // loop_exit
      _
    %1532 = vsyncpa [#allocation3], 1
    %s1533 = scalar_lea.sflag [#allocation3], 1
    %1534 = vsyncpa %s1533, 1

</llo_original>
